<compile_context>
chip_gen: v7x
topology: tpu7x:2x2x1
jax: 0.10.0
libtpu: 0.0.40
codegen_flags: <defaults>
</compile_context>

<pallas_src>
import functools
import math

import jax
import jax.numpy as jnp
import numpy as np
from jax.experimental import pallas as pl
from jax.experimental.pallas import tpu as pltpu


def _eca_kernel(w_ref, x_ref, o_ref, *, k, inv_hw, C):
    # w_ref: (k,) conv taps in SMEM.
    # x_ref, o_ref: (Bt, C, H*W) blocks in VMEM (lane-dense last dim).
    x = x_ref[...]                                            # native dtype

    # Global average pool over the spatial (lane) axis, f32 accumulation only
    # (no full f32 copy of the block is kept around).
    avg = jnp.sum(x, axis=-1, dtype=jnp.float32) * inv_hw     # (Bt, C) f32

    # Zero-padded 1-D conv over the channel axis: k taps, SMEM scalar weights,
    # accumulated on the VPU (tiny (Bt, C) intermediates, no MXU involved).
    pad = k // 2
    if pad:
        zpad = jnp.zeros((avg.shape[0], pad), jnp.float32)
        avg_p = jnp.concatenate([zpad, avg, zpad], axis=1)    # (Bt, C + 2*pad)
    else:
        avg_p = avg
    w = [w_ref[j] for j in range(k)]                          # hoisted scalar reads
    out = w[0] * avg_p[:, 0:C]
    for j in range(1, k):
        out = out + w[j] * avg_p[:, j:j + C]

    # Sigmoid on the EUP, then the big broadcast multiply in the NATIVE dtype.
    scale = jax.nn.sigmoid(out).astype(o_ref.dtype)           # (Bt, C)
    # TODO(synk): on v5e (no bf16 VALU) a bf16 input would prefer an f32
    # product path; v6e/v7x multiply bf16 natively, f32 inputs are unaffected.
    o_ref[...] = x * scale[:, :, None]


def _vmem_capacity_bytes():
    try:
        return int(pltpu.get_tpu_info().vmem_capacity_bytes)
    except Exception:
        return 128 * 1024 * 1024      # v5e/v6e default if query unavailable


def eca_block_forward(x, conv_w):
    """x: (B, C, H, W); conv_w: (k,) taps of Conv1d(1, 1, k, padding=k//2, bias=False)."""
    B, C, H, W = x.shape
    HW = H * W
    k = int(conv_w.shape[0])
    itemsize = x.dtype.itemsize

    x2 = x.reshape(B, C, HW)          # free contiguous reshape (lane-dense last dim)

    # Generation-aware block / VMEM budgeting.  in + out, double-buffered
    # => ~4x the block size of scoped VMEM in flight at once.
    vmem_cap = _vmem_capacity_bytes()
    if vmem_cap >= 100 * 1024 * 1024:          # v5e / v6e (128 MiB physical)
        vmem_limit = 64 * 1024 * 1024
        target_block_bytes = 12 * 1024 * 1024
    else:                                      # v7x (64 MiB physical)
        vmem_limit = 32 * 1024 * 1024
        target_block_bytes = 7 * 1024 * 1024

    # Batch-block size: as large as the budget allows, but keep >= 2 grid steps
    # when B >= 2 so both v7x TensorCores get work and DMA/compute overlap.
    bytes_per_batch = C * HW * itemsize
    bt = max(1, min(max(1, B // 2),
                    target_block_bytes // max(1, bytes_per_batch)))
    num_blocks = pl.cdiv(B, bt)       # ragged tail OK: batches are independent,
                                      # OOB reads unspecified, OOB writes dropped.
    # TODO(synk): for B == 1 with a very large C*H*W slab (v7x), add a
    # channel-block grid axis with a k//2 halo so both TensorCores are used and
    # blocks fit 64 MiB VMEM without splitting into separate pool/scale passes.
    # TODO(synk): if H*W is far from a multiple of 128 (e.g. 14x14), consider a
    # padded-HW layout with a masked pool sum to avoid vst.msk partial stores.

    kernel = functools.partial(_eca_kernel, k=k, inv_hw=1.0 / float(HW), C=C)

    cost = pl.CostEstimate(
        flops=3 * B * C * HW,                  # pool sum + broadcast multiply
        transcendentals=B * C,                 # sigmoid
        bytes_accessed=2 * B * C * HW * itemsize,
    )

    out = pl.pallas_call(
        kernel,
        out_shape=jax.ShapeDtypeStruct((B, C, HW), x.dtype),
        grid_spec=pltpu.PrefetchScalarGridSpec(
            num_scalar_prefetch=0,
            grid=(num_blocks,),
            in_specs=[
                pl.BlockSpec(memory_space=pltpu.MemorySpace.SMEM),   # conv taps
                pl.BlockSpec((bt, C, HW), lambda b: (b, 0, 0)),      # x block
            ],
            out_specs=pl.BlockSpec((bt, C, HW), lambda b: (b, 0, 0)),
        ),
        compiler_params=pltpu.CompilerParams(
            dimension_semantics=("parallel",),
            vmem_limit_bytes=vmem_limit,
        ),
        cost_estimate=cost,
    )(conv_w, x2)

    return out.reshape(B, C, H, W)


def eca_reference(x, conv_w):
    """Pure-JAX reference matching the PyTorch forward exactly."""
    B, C, H, W = x.shape
    k = conv_w.shape[0]
    pad = k // 2
    avg = jnp.mean(x, axis=(2, 3))                            # (B, C)
    avg_p = jnp.pad(avg, ((0, 0), (pad, pad)))                # (B, C + 2*pad)
    out = jnp.zeros((B, C), x.dtype)
    for j in range(k):
        out = out + conv_w[j] * avg_p[:, j:j + C]
    scale = jax.nn.sigmoid(out)[:, :, None, None]             # (B, C, 1, 1)
    return x * scale


if __name__ == "__main__":
    # Shapes consistent with the module: C chosen so the adaptive kernel size
    # is > 1 (C=64 -> kernel_size=3, padding=1).
    B, C, H, W = 2, 64, 16, 16
    gamma, b = 2, 1
    kernel_size = int(abs((math.log(C, 2) + b) / gamma))
    kernel_size = kernel_size if kernel_size % 2 else kernel_size + 1

    key = jax.random.PRNGKey(0)
    kx, kw = jax.random.split(key)
    x = jax.random.normal(kx, (B, C, H, W), dtype=jnp.float32)
    # Deterministic synthetic Conv1d weight of shape (out=1, in=1, k) -> (k,)
    conv_w = (jax.random.normal(kw, (kernel_size,), dtype=jnp.float32)
              / math.sqrt(kernel_size))

    out = jax.block_until_ready(eca_block_forward(x, conv_w))
    ref = jax.block_until_ready(eca_reference(x, conv_w))

    np.testing.assert_allclose(np.asarray(out), np.asarray(ref),
                               rtol=1e-5, atol=1e-5)
    print("KERNEL_OK")
</pallas_src>

<mosaic_0001>
module attributes {stable_mosaic.version = 11 : i64} {
  func.func @_eca_kernel(%arg0: i32, %arg1: memref<3xf32, #tpu.memory_space<smem>>, %arg2: memref<1x64x256xf32, #tpu.memory_space<vmem>>, %arg3: memref<1x64x256xf32, #tpu.memory_space<vmem>>) attributes {dimension_semantics = [#tpu.dimension_semantics<parallel>], iteration_bounds = array<i64: 2>, scalar_prefetch = 0 : i64, scratch_operands = 0 : i64, tpu.core_type = #tpu.core_type<tc>, window_params = [{transform_indices = @transform_0, window_bounds = array<i64: 3>}, {transform_indices = @transform_1, window_bounds = array<i64: 1, 64, 256>}, {transform_indices = @transform_2, window_bounds = array<i64: 1, 64, 256>}]} {
    %c0 = arith.constant 0 : index
    %c0_0 = arith.constant 0 : index
    %c0_1 = arith.constant 0 : index
    %0 = vector.load %arg2[%c0, %c0_0, %c0_1] : memref<1x64x256xf32, #tpu.memory_space<vmem>>, vector<1x64x256xf32>
    %cst = arith.constant dense<0.000000e+00> : vector<1x64xf32>
    %1 = vector.multi_reduction <add>, %0, %cst [2] : vector<1x64x256xf32> to vector<1x64xf32>
    %cst_2 = arith.constant 3.906250e-03 : f32
    %2 = vector.broadcast %cst_2 : f32 to vector<1x64xf32>
    %3 = arith.mulf %1, %2 : vector<1x64xf32>
    %cst_3 = arith.constant 0.000000e+00 : f32
    %4 = vector.broadcast %cst_3 : f32 to vector<1x1xf32>
    %5 = tpu.concatenate %4, %3, %4 in 1 : vector<1x1xf32>, vector<1x64xf32>, vector<1x1xf32> -> vector<1x66xf32>
    %c0_4 = arith.constant 0 : index
    %6 = memref.load %arg1[%c0_4] : memref<3xf32, #tpu.memory_space<smem>>
    %c1 = arith.constant 1 : index
    %7 = memref.load %arg1[%c1] : memref<3xf32, #tpu.memory_space<smem>>
    %c2 = arith.constant 2 : index
    %8 = memref.load %arg1[%c2] : memref<3xf32, #tpu.memory_space<smem>>
    %9 = vector.extract_strided_slice %5 {offsets = [0, 0], sizes = [1, 64], strides = [1, 1]} : vector<1x66xf32> to vector<1x64xf32>
    %10 = vector.broadcast %6 : f32 to vector<1x64xf32>
    %11 = arith.mulf %10, %9 : vector<1x64xf32>
    %12 = vector.extract_strided_slice %5 {offsets = [0, 1], sizes = [1, 64], strides = [1, 1]} : vector<1x66xf32> to vector<1x64xf32>
    %13 = vector.broadcast %7 : f32 to vector<1x64xf32>
    %14 = arith.mulf %13, %12 : vector<1x64xf32>
    %15 = arith.addf %11, %14 : vector<1x64xf32>
    %16 = vector.extract_strided_slice %5 {offsets = [0, 2], sizes = [1, 64], strides = [1, 1]} : vector<1x66xf32> to vector<1x64xf32>
    %17 = vector.broadcast %8 : f32 to vector<1x64xf32>
    %18 = arith.mulf %17, %16 : vector<1x64xf32>
    %19 = arith.addf %15, %18 : vector<1x64xf32>
    %20 = arith.negf %19 : vector<1x64xf32>
    %21 = math.exp %20 : vector<1x64xf32>
    %cst_5 = arith.constant 1.000000e+00 : f32
    %22 = vector.broadcast %cst_5 : f32 to vector<1x64xf32>
    %23 = arith.addf %22, %21 : vector<1x64xf32>
    %24 = arith.divf %22, %23 : vector<1x64xf32>
    %25 = vector.shape_cast %24 : vector<1x64xf32> to vector<1x64x1xf32>
    %26 = vector.broadcast %25 : vector<1x64x1xf32> to vector<1x64x256xf32>
    %27 = arith.mulf %0, %26 : vector<1x64x256xf32>
    %c0_6 = arith.constant 0 : index
    %c0_7 = arith.constant 0 : index
    %c0_8 = arith.constant 0 : index
    %28 = vector.load %arg3[%c0_6, %c0_7, %c0_8] : memref<1x64x256xf32, #tpu.memory_space<vmem>>, vector<1x64x256xf32>
    tpu.vector_store %arg3[%c0_6, %c0_7, %c0_8], %27 {strides = array<i32>} : memref<1x64x256xf32, #tpu.memory_space<vmem>>, vector<1x64x256xf32>,
    return
  }
  func.func @transform_0(%arg0: i32) -> i32 {
    %c0_i32 = arith.constant 0 : i32
    %c0_i32_0 = arith.constant 0 : i32
    return %c0_i32 : i32
  }
  func.func @transform_1(%arg0: i32) -> (i32, i32, i32) {
    %c0_i32 = arith.constant 0 : i32
    %c0_i32_0 = arith.constant 0 : i32
    %c0_i32_1 = arith.constant 0 : i32
    return %arg0, %c0_i32, %c0_i32_0 : i32, i32, i32
  }
  func.func @transform_2(%arg0: i32) -> (i32, i32, i32) {
    %c0_i32 = arith.constant 0 : i32
    %c0_i32_0 = arith.constant 0 : i32
    %c0_i32_1 = arith.constant 0 : i32
    return %arg0, %c0_i32, %c0_i32_0 : i32, i32, i32
  }
}

</mosaic_0001>

<llo_original>
// kernel: tpu_custom_call.1
$region0: #{tpu_custom_call.1}
  #allocation0 [shape = 'u32[]', space=smem, size = 0x4, offset = 0x4, fixed_abs, tag = 'smem constant byte address 0x4 - core index']
  #allocation1 [shape = 'u32[144,128]{1,0:T(1,128)}', space=vmem, size = 0x12000, scoped, tag = 'internal scratch']
  %s0 = inlined_call_operand.hbm [shape: f32[3], index: 0, kind: input, shape index: {}]
  %s1 = inlined_call_operand.hbm [shape: f32[2,64,256], index: 1, kind: input, shape index: {}]
  %s2 = inlined_call_operand.hbm [shape: f32[2,64,256], index: 2, kind: output, shape index: {}]
  %s3 = sld [smem:[#allocation0]]
  $region49: #{tpu_custom_call.1} parent=0
    _
  %s5 = ssub.s32 1, %s3
  %s6 = scalar_select 0, %s5, %s3
  $region1: #{tpu_custom_call.1} parent=0
    #allocation2 [shape = 'u8[512]{0}', space=smem, size = 0x200, scoped, tag = 'input window, operand 0, single buffered']
    #allocation3 [shape = 's32[2]{0}', space=sflag, size = 0x8, scoped, tag = 'scoped memory for tpu_custom_call.1']
    #allocation4 [shape = 's32[2]{0}', space=sflag, size = 0x8, scoped, tag = 'scoped memory for tpu_custom_call.1']
    #allocation5 [shape = 's32[2]{0}', space=sflag, size = 0x8, scoped, tag = 'scoped memory for tpu_custom_call.1']
    #allocation6 [shape = 'u8[131072]{0}', space=vmem, size = 0x20000, scoped, tag = 'input window, operand 1']
    #allocation7 [shape = 'u8[131072]{0}', space=vmem, size = 0x20000, scoped, tag = 'output window, operand 0']
    %7 = vsyncpa [#allocation5], 0
    %8 = vsyncpa [#allocation3], 0
    %s9 = scalar_lea.sflag [#allocation3], 1
    %10 = vsyncpa %s9, 0
    %11 = vsyncpa [#allocation4], 0
    %s12 = scalar_lea.sflag [#allocation4], 1
    %13 = vsyncpa %s12, 0
    loop: start=0, step=1, limit=4
    $region2: #{tpu_custom_call.1} parent=1 // loop_pre_header
      _
    $region3: #{tpu_custom_call.1} parent=1 // loop_header
      %s15 = sphi 0, %s19
      %p16 = scmp.ge.s32.totalorder %s15, 4
      %s23 = sphi 0, %s23
      %s25 = sphi 0, %s23
      %s26 = sphi 0, %s25
      %s40 = sphi 0, %s26
      %s46 = sphi 0, %s48
      %s49 = sphi 0, %s46
      %s50 = sphi 0, %s49
      %s66 = sphi 0, %s50
      %s72 = sphi 0, %s74
      %s75 = sphi 0, %s72
      %s76 = sphi 0, %s75
      %s92 = sphi 0, %s76
    $region4: #{tpu_custom_call.1} parent=1 // loop_header_branch
      %18 = sbr.rel (%p16) target = $region8
    $region5: #{tpu_custom_call.1} parent=1 // loop_body
      %s20 = ssub.s32 %s15, 1
      %s21 = ssub.s32 %s15, 2
      %s22 = sadd.s32 %s15, 1
      %s24 = sadd.s32 %s23, 1
      %p27 = scmp.eq.s32.totalorder %s15, 1
      %p28 = scmp.ne.s32.totalorder %s23, %s25
      %p29 = scmp.eq.s32.totalorder %s15, 0
      %p30 = por %p28, %p29
      %p31 = scmp.ne.s32.totalorder %s23, %s25
      %p32 = scmp.eq.s32.totalorder %s20, 1
      %p33 = por %p31, %p32
      %p34 = scmp.ne.s32.totalorder %s25, %s26
      %p35 = scmp.eq.s32.totalorder %s20, 0
      %p36 = por %p34, %p35
      %p37 = scmp.ne.s32.totalorder %s25, %s26
      %p38 = scmp.eq.s32.totalorder %s21, 1
      %p39 = por %p37, %p38
      %p41 = scmp.ne.s32.totalorder %s26, %s40
      %p42 = scmp.eq.s32.totalorder %s21, 0
      %p43 = por %p41, %p42
      %s44 = ssub.s32 %s15, %s22
      %p45 = scmp.eq.s32.totalorder %s44, 0
      %s47 = sadd.s32 %s46, 1
      %s48 = scalar_select %p45, %s46, %s47
      %p51 = pneg %p45
      %p52 = scmp.eq.s32.totalorder %s15, 1
      %p53 = por %p51, %p52
      %p54 = scmp.ne.s32.totalorder %s46, %s49
      %p55 = scmp.eq.s32.totalorder %s15, 0
      %p56 = por %p54, %p55
      %p57 = scmp.ne.s32.totalorder %s46, %s49
      %p58 = scmp.eq.s32.totalorder %s20, 1
      %p59 = por %p57, %p58
      %p60 = scmp.ne.s32.totalorder %s49, %s50
      %p61 = scmp.eq.s32.totalorder %s20, 0
      %p62 = por %p60, %p61
      %p63 = scmp.ne.s32.totalorder %s49, %s50
      %p64 = scmp.eq.s32.totalorder %s21, 1
      %p65 = por %p63, %p64
      %p67 = scmp.ne.s32.totalorder %s50, %s66
      %p68 = scmp.eq.s32.totalorder %s21, 0
      %p69 = por %p67, %p68
      %s70 = ssub.s32 %s15, %s22
      %p71 = scmp.eq.s32.totalorder %s70, 0
      %s73 = sadd.s32 %s72, 1
      %s74 = scalar_select %p71, %s72, %s73
      %p77 = pneg %p71
      %p78 = scmp.eq.s32.totalorder %s15, 1
      %p79 = por %p77, %p78
      %p80 = scmp.ne.s32.totalorder %s72, %s75
      %p81 = scmp.eq.s32.totalorder %s15, 0
      %p82 = por %p80, %p81
      %p83 = scmp.ne.s32.totalorder %s72, %s75
      %p84 = scmp.eq.s32.totalorder %s20, 1
      %p85 = por %p83, %p84
      %p86 = scmp.ne.s32.totalorder %s75, %s76
      %p87 = scmp.eq.s32.totalorder %s20, 0
      %p88 = por %p86, %p87
      %p89 = scmp.ne.s32.totalorder %s75, %s76
      %p90 = scmp.eq.s32.totalorder %s21, 1
      %p91 = por %p89, %p90
      %p93 = scmp.ne.s32.totalorder %s76, %s92
      %p94 = scmp.eq.s32.totalorder %s21, 0
      %p95 = por %p93, %p94
      %p96 = scmp.le.s32.totalorder 1, %s15
      %p97 = scmp.lt.s32.totalorder %s15, 3
      %p98 = pnand %p96, %p97
      %p99 = pneg %p98
      // Predicated region
      $region9: #{tpu_custom_call.1} parent=5 // pred_check
        _
      $region10: #{tpu_custom_call.1} parent=5 // pred_check_branch
        %101 = sbr.rel (%p98) target = $region12
      $region11: #{tpu_custom_call.1} parent=5 // pred_region
        %s102 = ssub.s32 %s15, 1
        // Predicated region
        $region13: #{tpu_custom_call.1} parent=11 // pred_check
          %p103 = pneg %p36
        $region14: #{tpu_custom_call.1} parent=11 // pred_check_branch
          %105 = sbr.rel (%p103) target = $region16
        $region15: #{tpu_custom_call.1} parent=11 // pred_region
          %s107 = ssub.s32 16, 16
          %108 = vsyncadd [#allocation5], %s107
          %111 = dma.hbm_to_smem %s0, 16, [#allocation2], [#allocation5]
        $region16: #{tpu_custom_call.1} parent=11 // pred_fallthru
          _
      $region12: #{tpu_custom_call.1} parent=5 // pred_fallthru
        _
      %p112 = scmp.lt.s32.totalorder %s15, 2
      // Predicated region
      $region17: #{tpu_custom_call.1} parent=5 // pred_check
        %p113 = pneg %p112
      $region18: #{tpu_custom_call.1} parent=5 // pred_check_branch
        %115 = sbr.rel (%p113) target = $region20
      $region19: #{tpu_custom_call.1} parent=5 // pred_region
        // Predicated region
        $region21: #{tpu_custom_call.1} parent=19 // pred_check
          %p116 = pneg %p56
        $region22: #{tpu_custom_call.1} parent=19 // pred_check_branch
          %118 = sbr.rel (%p116) target = $region24
        $region23: #{tpu_custom_call.1} parent=19 // pred_region
          %s119 = sand.u32 %s46, 1
          %s120 = scalar_lea.sflag [#allocation3], %s119
          %s121 = sand.u32 %s46, 1
          %s122 = smul.addr %s121, 128
          %s123 = scalar_lea.vmem [#allocation6], %s122
          %s125 = ssub.s32 2048, 2048
          %126 = vsyncadd %s120, %s125
          %s127 = smul.addr %s15, 16
          %s128 = smul.addr %s127, 128
          %s129 = scalar_lea.hbm %s1, %s128
          %s130 = sshll.u32 %s123, 4
          %s131 = int_to_ptr.vmem [resolvable:$true] %s130
          %136 = dma.hbm_to_vmem [thread:$0]  %s129, 2048, %s131, %s120, 256, 256, 16
        $region24: #{tpu_custom_call.1} parent=19 // pred_fallthru
          _
      $region20: #{tpu_custom_call.1} parent=5 // pred_fallthru
        _
      %p137 = scmp.le.s32.totalorder 1, %s15
      %p138 = scmp.lt.s32.totalorder %s15, 3
      %p139 = pnand %p137, %p138
      %p140 = pneg %p139
      // Predicated region
      $region25: #{tpu_custom_call.1} parent=5 // pred_check
        _
      $region26: #{tpu_custom_call.1} parent=5 // pred_check_branch
        %142 = sbr.rel (%p139) target = $region28
      $region27: #{tpu_custom_call.1} parent=5 // pred_region
        %s143 = ssub.s32 %s15, 1
        // Predicated region
        $region29: #{tpu_custom_call.1} parent=27 // pred_check
          %p144 = pneg %p36
        $region30: #{tpu_custom_call.1} parent=27 // pred_check_branch
          %146 = sbr.rel (%p144) target = $region32
        $region31: #{tpu_custom_call.1} parent=27 // pred_region
          %147 = dma.done [#allocation5], 16
        $region32: #{tpu_custom_call.1} parent=27 // pred_fallthru
          _
        %s148 = sand.u32 %s49, 1
        %s149 = scalar_lea.sflag [#allocation3], %s148
        %s150 = sand.u32 %s49, 1
        %s151 = smul.addr %s150, 128
        %s152 = scalar_lea.vmem [#allocation6], %s151
        // Predicated region
        $region33: #{tpu_custom_call.1} parent=27 // pred_check
          %p153 = pneg %p62
        $region34: #{tpu_custom_call.1} parent=27 // pred_check_branch
          %155 = sbr.rel (%p153) target = $region36
        $region35: #{tpu_custom_call.1} parent=27 // pred_region
          %156 = dma.done %s149, 2048
        $region36: #{tpu_custom_call.1} parent=27 // pred_fallthru
          _
        %157 = sfence
        %p158 = pneg %p36
        %p159 = pneg %p33
        %s160 = sand.u32 %s49, 1
        %s161 = scalar_lea.sflag [#allocation3], %s160
        %s162 = sand.u32 %s49, 1
        %s163 = smul.addr %s162, 128
        %s164 = scalar_lea.vmem [#allocation6], %s163
        %p165 = pneg %p62
        %p166 = pneg %p59
        %p167 = pneg %p88
        %p168 = pneg %p85
        %s169 = sand.u32 %s75, 1
        %s170 = scalar_lea.sflag [#allocation4], %s169
        %s171 = sand.u32 %s75, 1
        %s172 = smul.addr %s171, 128
        %s173 = scalar_lea.vmem [#allocation7], %s172
        %v174 = vld [vmem:[%s152] sm:$0xff]
        %v175 = vld [vmem:[%s152 + $0x8] sm:$0xff]
        %v176 = vld [vmem:[%s152 + $0x10] sm:$0xff]
        %v177 = vld [vmem:[%s152 + $0x18] sm:$0xff]
        %v178 = vld [vmem:[%s152 + $0x20] sm:$0xff]
        %v179 = vld [vmem:[%s152 + $0x28] sm:$0xff]
        %v180 = vld [vmem:[%s152 + $0x30] sm:$0xff]
        %v181 = vld [vmem:[%s152 + $0x38] sm:$0xff]
        %v182 = vld [vmem:[%s152 + $0x40] sm:$0xff]
        %v183 = vld [vmem:[%s152 + $0x48] sm:$0xff]
        %v184 = vld [vmem:[%s152 + $0x50] sm:$0xff]
        %v185 = vld [vmem:[%s152 + $0x58] sm:$0xff]
        %v186 = vld [vmem:[%s152 + $0x60] sm:$0xff]
        %v187 = vld [vmem:[%s152 + $0x68] sm:$0xff]
        %v188 = vld [vmem:[%s152 + $0x70] sm:$0xff]
        %v189 = vld [vmem:[%s152 + $0x78] sm:$0xff]
        %v190 = vadd.f32 %v174, %v175
        %191 = vadd.xlane.f32.xlu0 %v190
        %v192 = vpop.xlane.xlu0 %191
        %v193 = vadd.f32 %v176, %v177
        %194 = vadd.xlane.f32.xlu0 %v193
        %v195 = vpop.xlane.xlu0 %194
        %v196 = vadd.f32 %v178, %v179
        %197 = vadd.xlane.f32.xlu0 %v196
        %v198 = vpop.xlane.xlu0 %197
        %v199 = vadd.f32 %v180, %v181
        %200 = vadd.xlane.f32.xlu0 %v199
        %v201 = vpop.xlane.xlu0 %200
        %v202 = vadd.f32 %v182, %v183
        %203 = vadd.xlane.f32.xlu0 %v202
        %v204 = vpop.xlane.xlu0 %203
        %v205 = vadd.f32 %v184, %v185
        %206 = vadd.xlane.f32.xlu0 %v205
        %v207 = vpop.xlane.xlu0 %206
        %v208 = vadd.f32 %v186, %v187
        %209 = vadd.xlane.f32.xlu0 %v208
        %v210 = vpop.xlane.xlu0 %209
        %v211 = vadd.f32 %v188, %v189
        %212 = vadd.xlane.f32.xlu0 %v211
        %v213 = vpop.xlane.xlu0 %212
        %v214 = vmul.f32 %v192, 0.00390625
        %v215 = vmul.f32 %v195, 0.00390625
        %v216 = vmul.f32 %v198, 0.00390625
        %v217 = vmul.f32 %v201, 0.00390625
        %v218 = vmul.f32 %v204, 0.00390625
        %v219 = vmul.f32 %v207, 0.00390625
        %v220 = vmul.f32 %v210, 0.00390625
        %v221 = vmul.f32 %v213, 0.00390625
        %v230 = vlaneseq
        %v231 = vand.u32 %v230, 127
        %v232 = vadd.s32 %v231, 4294967295
        %v233 = vlaneseq
        %v234 = vshrl.u32 %v233, 7
        %v235 = vsub.s32 %v232, %v234
        %v236 = vrot.slane %v214, %v235
        %v237 = vadd.s32 %v231, 4294967287
        %v238 = vlaneseq
        %v239 = vshrl.u32 %v238, 7
        %v240 = vsub.s32 %v237, %v239
        %v241 = vrot.slane %v215, %v240
        %vm242 = vcmask 138312
        %v243 = vsel %vm242, %v241, %v236
        %v244 = vadd.s32 %v231, 4294967279
        %v245 = vlaneseq
        %v246 = vshrl.u32 %v245, 7
        %v247 = vsub.s32 %v244, %v246
        %v248 = vrot.slane %v216, %v247
        %vm249 = vcmask 203912
        %v250 = vsel %vm249, %v248, %v243
        %v251 = vadd.s32 %v231, 4294967271
        %v252 = vlaneseq
        %v253 = vshrl.u32 %v252, 7
        %v254 = vsub.s32 %v251, %v253
        %v255 = vrot.slane %v217, %v254
        %vm256 = vcmask 269512
        %v257 = vsel %vm256, %v255, %v250
        %v258 = vadd.s32 %v231, 4294967263
        %v259 = vlaneseq
        %v260 = vshrl.u32 %v259, 7
        %v261 = vsub.s32 %v258, %v260
        %v262 = vrot.slane %v218, %v261
        %vm263 = vcmask 335112
        %v264 = vsel %vm263, %v262, %v257
        %v265 = vadd.s32 %v231, 4294967255
        %v266 = vlaneseq
        %v267 = vshrl.u32 %v266, 7
        %v268 = vsub.s32 %v265, %v267
        %v269 = vrot.slane %v219, %v268
        %vm270 = vcmask 400712
        %v271 = vsel %vm270, %v269, %v264
        %v272 = vadd.s32 %v231, 4294967247
        %v273 = vlaneseq
        %v274 = vshrl.u32 %v273, 7
        %v275 = vsub.s32 %v272, %v274
        %v276 = vrot.slane %v220, %v275
        %vm277 = vcmask 466312
        %v278 = vsel %vm277, %v276, %v271
        %v279 = vadd.s32 %v231, 4294967239
        %v280 = vlaneseq
        %v281 = vshrl.u32 %v280, 7
        %v282 = vsub.s32 %v279, %v281
        %v283 = vrot.slane %v221, %v282
        %vm284 = vcmask 531912
        %v285 = vsel %vm284, %v283, %v278
        %vm287 = vcmask 7168
        %v288 = vsel %vm287, 0.0, %v285
        %vm289 = vcmask 531456
        %v290 = vsel %vm289, %v288, 0.0
        %s291 = sld [smem:[#allocation2]]
        %s292 = sld [smem:[#allocation2 + $0x1]]
        %s293 = sld [smem:[#allocation2 + $0x2]]
        %v294 = vstv %s291
        %v295 = vmul.f32 %v294, %v290
        %v296 = vstv %s292
        %v297 = vmul.f32 %v296, %v290
        %299 = vrot.lane.b32.xlu0 %v297, 127
        %v300 = vpop.permute.xlu0 %299
        %v302 = vadd.f32 %v295, %v300
        %v303 = vstv %s293
        %v304 = vmul.f32 %v303, %v290
        %306 = vrot.lane.b32.xlu0 %v304, 126
        %v307 = vpop.permute.xlu0 %306
        %v309 = vadd.f32 %v302, %v307
        %v310 = vxor.u32 %v309, 2147483648
        %v311 = vmul.f32 %v310, 1.442695
        %v312 = vpow.pop %v311
        %v313 = vadd.f32 %v312, 1.0
        %v314 = vrcp.pop %v313
        %v315 = vmul.f32 1.0, %v314
        %v316 = vlaneseq
        %v317 = vshrl.u32 %v316, 7
        %v318 = vsub.s32 0, %v317
        %v319 = vrot.slane %v315, %v318
        %321 = vbcast.lane.b32.xlu0 %v319, 256
        %v322 = vpop.permute.xlu0 %321
        %s324 = sor.u32 256, 8
        %325 = vbcast.lane.b32.xlu0 %v319, %s324
        %v326 = vpop.permute.xlu0 %325
        %s328 = sor.u32 256, 16
        %329 = vbcast.lane.b32.xlu0 %v319, %s328
        %v330 = vpop.permute.xlu0 %329
        %s332 = sor.u32 256, 24
        %333 = vbcast.lane.b32.xlu0 %v319, %s332
        %v334 = vpop.permute.xlu0 %333
        %s336 = sor.u32 256, 32
        %337 = vbcast.lane.b32.xlu0 %v319, %s336
        %v338 = vpop.permute.xlu0 %337
        %s340 = sor.u32 256, 40
        %341 = vbcast.lane.b32.xlu0 %v319, %s340
        %v342 = vpop.permute.xlu0 %341
        %s344 = sor.u32 256, 48
        %345 = vbcast.lane.b32.xlu0 %v319, %s344
        %v346 = vpop.permute.xlu0 %345
        %s348 = sor.u32 256, 56
        %349 = vbcast.lane.b32.xlu0 %v319, %s348
        %v350 = vpop.permute.xlu0 %349
        %v351 = vmul.f32 %v174, %v322
        %v352 = vmul.f32 %v175, %v322
        %v353 = vmul.f32 %v176, %v326
        %v354 = vmul.f32 %v177, %v326
        %v355 = vmul.f32 %v178, %v330
        %v356 = vmul.f32 %v179, %v330
        %v357 = vmul.f32 %v180, %v334
        %v358 = vmul.f32 %v181, %v334
        %v359 = vmul.f32 %v182, %v338
        %v360 = vmul.f32 %v183, %v338
        %v361 = vmul.f32 %v184, %v342
        %v362 = vmul.f32 %v185, %v342
        %v363 = vmul.f32 %v186, %v346
        %v364 = vmul.f32 %v187, %v346
        %v365 = vmul.f32 %v188, %v350
        %v366 = vmul.f32 %v189, %v350
        %367 = vst [vmem:[%s173] sm:$0xff] %v351
        %368 = vst [vmem:[%s173 + $0x8] sm:$0xff] %v352
        %369 = vst [vmem:[%s173 + $0x10] sm:$0xff] %v353
        %370 = vst [vmem:[%s173 + $0x18] sm:$0xff] %v354
        %371 = vst [vmem:[%s173 + $0x20] sm:$0xff] %v355
        %372 = vst [vmem:[%s173 + $0x28] sm:$0xff] %v356
        %373 = vst [vmem:[%s173 + $0x30] sm:$0xff] %v357
        %374 = vst [vmem:[%s173 + $0x38] sm:$0xff] %v358
        %375 = vst [vmem:[%s173 + $0x40] sm:$0xff] %v359
        %376 = vst [vmem:[%s173 + $0x48] sm:$0xff] %v360
        %377 = vst [vmem:[%s173 + $0x50] sm:$0xff] %v361
        %378 = vst [vmem:[%s173 + $0x58] sm:$0xff] %v362
        %379 = vst [vmem:[%s173 + $0x60] sm:$0xff] %v363
        %380 = vst [vmem:[%s173 + $0x68] sm:$0xff] %v364
        %381 = vst [vmem:[%s173 + $0x70] sm:$0xff] %v365
        %382 = vst [vmem:[%s173 + $0x78] sm:$0xff] %v366
        %s383 = sand.u32 %s75, 1
        %s384 = scalar_lea.sflag [#allocation4], %s383
        %s385 = sand.u32 %s75, 1
        %s386 = smul.addr %s385, 128
        %s387 = scalar_lea.vmem [#allocation7], %s386
        // Predicated region
        $region37: #{tpu_custom_call.1} parent=27 // pred_check
          %p388 = pneg %p85
        $region38: #{tpu_custom_call.1} parent=27 // pred_check_branch
          %390 = sbr.rel (%p388) target = $region40
        $region39: #{tpu_custom_call.1} parent=27 // pred_region
          %s392 = ssub.s32 2048, 2048
          %393 = vsyncadd %s384, %s392
          %s394 = smul.addr %s20, 16
          %s395 = smul.addr %s394, 128
          %s396 = scalar_lea.hbm %s2, %s395
          %s397 = sshll.u32 %s387, 4
          %s398 = int_to_ptr.vmem [resolvable:$true] %s397
          %403 = dma.vmem_to_hbm [thread:$0]  %s398, 2048, %s396, %s384, 256, 256, 16
        $region40: #{tpu_custom_call.1} parent=27 // pred_fallthru
          _
      $region28: #{tpu_custom_call.1} parent=5 // pred_fallthru
        _
      %p404 = scmp.le.s32.totalorder 2, %s15
      // Predicated region
      $region41: #{tpu_custom_call.1} parent=5 // pred_check
        %p405 = pneg %p404
      $region42: #{tpu_custom_call.1} parent=5 // pred_check_branch
        %407 = sbr.rel (%p405) target = $region44
      $region43: #{tpu_custom_call.1} parent=5 // pred_region
        %s408 = ssub.s32 %s15, 2
        // Predicated region
        $region45: #{tpu_custom_call.1} parent=43 // pred_check
          %p409 = pneg %p91
        $region46: #{tpu_custom_call.1} parent=43 // pred_check_branch
          %411 = sbr.rel (%p409) target = $region48
        $region47: #{tpu_custom_call.1} parent=43 // pred_region
          %s412 = sand.u32 %s76, 1
          %s413 = scalar_lea.sflag [#allocation4], %s412
          %s414 = sand.u32 %s76, 1
          %s415 = smul.addr %s414, 128
          %s416 = scalar_lea.vmem [#allocation7], %s415
          %417 = dma.done %s413, 2048
        $region48: #{tpu_custom_call.1} parent=43 // pred_fallthru
          _
      $region44: #{tpu_custom_call.1} parent=5 // pred_fallthru
        _
    $region6: #{tpu_custom_call.1} parent=1 // loop_footer
      %s19 = sadd.s32 1, %s15
    $region7: #{tpu_custom_call.1} parent=1 // loop_footer_branch
      %14 = sbr.rel target = $region3
    $region8: #{tpu_custom_call.1} parent=1 // loop_exit
      _
    %418 = vsyncpa [#allocation3], 1
    %s419 = scalar_lea.sflag [#allocation3], 1
    %420 = vsyncpa %s419, 1
    %421 = vsyncpa [#allocation4], 1
    %s422 = scalar_lea.sflag [#allocation4], 1
    %423 = vsyncpa %s422, 1
    %424 = vsyncpa [#allocation5], 1
    %s425 = scalar_lea.sflag [#allocation5], 1
    %426 = vsyncpa %s425, 1

</llo_original>
